<compile_context>
chip_gen: v6e
topology: v6e:2x2x1
jax: 0.10.0
libtpu: 0.0.40
codegen_flags: <defaults>
</compile_context>

<pallas_src>
import functools
import math

import jax
import jax.numpy as jnp
from jax import lax
from jax.experimental import pallas as pl
from jax.experimental.pallas import tpu as pltpu

_EPS = 1e-12            # F.normalize default eps
_EPS2 = _EPS * _EPS
_LANE = 128
_HW_STEP = 512          # spatial tile granularity for the multi-tile path


def _vmem_capacity_bytes():
    try:
        return int(pltpu.get_tpu_info().vmem_capacity_bytes)
    except Exception:
        return 128 << 20


def _plan(B, C, HW, itemsize, target_tile_bytes):
    """Pick (bt, tile_hw, n_hw, c_chunk, inner_hw) for the grid / inner loops."""
    # dtype-aware channel chunk: one packed sublane group per inner read.
    c_chunk = 8 * max(1, 4 // itemsize)            # 8 f32 / 16 bf16 / 32 int8
    inner_hw = max(_LANE, 4096 // c_chunk)         # lanes per inner spatial chunk
    per_elem = C * HW * itemsize                   # one input, one batch element

    if per_elem <= target_tile_bytes:
        # Small per-element maps: block the batch so each grid step streams
        # a large slab; single spatial tile (no masking needed).
        bt = 1
        for d in range(1, B + 1):
            if B % d == 0 and d * per_elem <= target_tile_bytes:
                bt = d
        return bt, HW, 1, c_chunk, inner_hw

    # Large per-element maps: tile the spatial dim in multiples of _HW_STEP.
    budget = max(_HW_STEP,
                 (target_tile_bytes // (C * itemsize)) // _HW_STEP * _HW_STEP)
    if budget >= HW:
        return 1, HW, 1, c_chunk, inner_hw
    return 1, budget, int(pl.cdiv(HW, budget)), c_chunk, inner_hw


def _cosine_sim_loss_kernel(x_ref, y_ref, o_ref, acc_ref, *, with_norm,
                            negative, loss_weight, hw, tile_hw, inner_hw,
                            c_chunk, need_mask):
    t = pl.program_id(1)

    @pl.when(t == 0)
    def _init():
        acc_ref[...] = jnp.zeros_like(acc_ref)

    bt, c_total, t_hw = x_ref.shape
    n_full = c_total // c_chunk
    c_rem = c_total - n_full * c_chunk

    def chunk_sums(xs, ys):
        # Upcast only the small (bt, c_chunk, w) chunk to f32 on-core.
        xf = xs.astype(jnp.float32)
        yf = ys.astype(jnp.float32)
        d = jnp.sum(xf * yf, axis=1)
        if with_norm:
            return d, jnp.sum(xf * xf, axis=1), jnp.sum(yf * yf, axis=1)
        return (d,)

    # Static loop over small spatial chunks keeps the channel-loop carries in
    # vregs while the grid-step block (the DMA unit) stays large.
    for lo in range(0, t_hw, inner_hw):
        w = min(inner_hw, t_hw - lo)
        sl = slice(lo, lo + w)

        sums = None
        if n_full > 0:
            def body(ci, carry):
                c0 = pl.multiple_of(ci * c_chunk, c_chunk)
                part = chunk_sums(x_ref[:, pl.ds(c0, c_chunk), sl],
                                  y_ref[:, pl.ds(c0, c_chunk), sl])
                return tuple(a + b for a, b in zip(carry, part))
            zero = jnp.zeros((bt, w), jnp.float32)
            init = (zero, zero, zero) if with_norm else (zero,)
            sums = lax.fori_loop(0, n_full, body, init, unroll=(n_full <= 8))
        if c_rem > 0:
            part = chunk_sums(x_ref[:, c_total - c_rem:, sl],
                              y_ref[:, c_total - c_rem:, sl])
            sums = part if sums is None else tuple(
                a + b for a, b in zip(sums, part))

        if with_norm:
            dot, sxx, syy = sums
            # Exactly matches F.normalize(p=2, dim=1, eps=1e-12) on both
            # inputs: x / max(||x||, eps) == x * rsqrt(max(||x||^2, eps^2)).
            cos = (dot * lax.rsqrt(jnp.maximum(sxx, _EPS2))
                       * lax.rsqrt(jnp.maximum(syy, _EPS2)))
        else:
            cos = sums[0]

        if need_mask:
            # Ragged spatial tail: positions >= true HW contribute 0 (the
            # where() also squashes any NaN/Inf from uninitialized tail data).
            col = lax.broadcasted_iota(jnp.int32, (bt, w), 1) + (t * tile_hw + lo)
            cos = jnp.where(col < hw, cos, 0.0)

        # Lane-vector accumulation (pure VPU adds); one cross-lane reduce
        # total, in the finalize branch.
        if w == inner_hw:
            acc_ref[...] += cos
        else:
            acc_ref[:, :w] += cos

    @pl.when(t == pl.num_programs(1) - 1)
    def _finalize():
        mean_cos = jnp.sum(acc_ref[...], axis=-1, keepdims=True) * (1.0 / hw)
        if negative:
            loss = -mean_cos
        else:
            loss = 2.0 - 2.0 * mean_cos
        o_ref[...] = jnp.broadcast_to(loss * loss_weight,
                                      o_ref.shape).astype(o_ref.dtype)


def cosine_sim_loss(cls_score, label, *, loss_weight=1.0, with_norm=True,
                    negative=False, max_tile_bytes=None):
    """Pallas CosineSimLoss forward (pairwise=False). Inputs: (B, C, *spatial)."""
    assert cls_score.shape == label.shape
    assert cls_score.ndim >= 2
    B, C = cls_score.shape[:2]
    HW = int(math.prod(cls_score.shape[2:]))
    itemsize = cls_score.dtype.itemsize

    vmem_cap = _vmem_capacity_bytes()
    if max_tile_bytes is None:
        # Per-input tile target: ~6 MiB on 128 MiB-VMEM parts, ~4 MiB on v7x.
        max_tile_bytes = min(6 << 20, vmem_cap // 16)

    bt, tile_hw, n_hw, c_chunk, inner_hw = _plan(B, C, HW, itemsize,
                                                 int(max_tile_bytes))
    need_mask = (n_hw * tile_hw != HW)

    # Metadata-only reshape; no extra HBM pass and no padding.
    x = cls_score.reshape(B, C, HW)
    y = label.reshape(B, C, HW)

    kernel = functools.partial(
        _cosine_sim_loss_kernel,
        with_norm=bool(with_norm),
        negative=bool(negative),
        loss_weight=float(loss_weight),
        hw=HW,
        tile_hw=tile_hw,
        inner_hw=inner_hw,
        c_chunk=c_chunk,
        need_mask=need_mask,
    )

    # VMEM budget: 2 inputs x 2 pipeline buffers x tile plus headroom for the
    # small f32 intermediates; clamped to 3/4 of physical VMEM (v7x-safe).
    tile_bytes = bt * C * tile_hw * itemsize
    vmem_limit = int(min(max(4 * tile_bytes + (8 << 20), 16 << 20),
                         vmem_cap * 3 // 4))

    cost = pl.CostEstimate(
        flops=int(B * HW * ((6 * C + 8) if with_norm else 2 * C)),
        transcendentals=int(2 * B * HW) if with_norm else 0,
        bytes_accessed=int(2 * B * C * HW * itemsize + B * _LANE * 4),
    )

    out = pl.pallas_call(
        kernel,
        out_shape=jax.ShapeDtypeStruct((B, _LANE), jnp.float32),
        grid_spec=pltpu.PrefetchScalarGridSpec(
            num_scalar_prefetch=0,
            grid=(B // bt, n_hw),
            in_specs=[
                pl.BlockSpec((bt, C, tile_hw), lambda bi, ti: (bi, 0, ti)),
                pl.BlockSpec((bt, C, tile_hw), lambda bi, ti: (bi, 0, ti)),
            ],
            out_specs=pl.BlockSpec((bt, _LANE), lambda bi, ti: (bi, 0)),
            scratch_shapes=[pltpu.VMEM((bt, inner_hw), jnp.float32)],
        ),
        compiler_params=pltpu.CompilerParams(
            dimension_semantics=("parallel", "arbitrary"),
            vmem_limit_bytes=vmem_limit,
        ),
        cost_estimate=cost,
    )(x, y)

    return out[:, 0]


def _reference(cls_score, label, *, loss_weight=1.0, with_norm=True,
               negative=False):
    """Pure-JAX mirror of the PyTorch forward (pairwise=False)."""
    cs = cls_score.astype(jnp.float32)
    lb = label.astype(jnp.float32)
    if with_norm:
        def _norm(v):
            n = jnp.sqrt(jnp.sum(v * v, axis=1, keepdims=True))
            return v / jnp.maximum(n, _EPS)
        cs, lb = _norm(cs), _norm(lb)
    prod = jnp.sum(cs * lb, axis=1).reshape(cls_score.shape[0], -1)
    mean = jnp.mean(prod, axis=-1)
    loss = -mean if negative else 2.0 - 2.0 * mean
    return loss * loss_weight


if __name__ == "__main__":
    key = jax.random.PRNGKey(0)
    k = jax.random.split(key, 8)

    # 1) Default config, f32, spec shape (batch-blocked single-tile path).
    B, C, H, W = 2, 4, 16, 16
    a = jax.random.normal(k[0], (B, C, H, W), dtype=jnp.float32)
    b = jax.random.normal(k[1], (B, C, H, W), dtype=jnp.float32)
    out = jax.block_until_ready(cosine_sim_loss(a, b))
    ref = _reference(a, b)
    assert out.shape == (B,)
    assert jnp.allclose(out, ref, atol=1e-5, rtol=1e-5), (out, ref)

    # 2) bf16 storage (upcast inside the kernel; 16-row channel chunks).
    a16 = jax.random.normal(k[2], (B, C, H, W), dtype=jnp.bfloat16)
    b16 = jax.random.normal(k[3], (B, C, H, W), dtype=jnp.bfloat16)
    out16 = jax.block_until_ready(cosine_sim_loss(a16, b16))
    ref16 = _reference(a16, b16)
    assert jnp.allclose(out16, ref16, atol=1e-4, rtol=1e-4), (out16, ref16)

    # 3) Multi-tile spatial path with ragged-tail masking + channel fori-loop,
    #    negative=True and a non-unit loss_weight (tiny forced tile budget).
    Hc, Wc, Cc = 27, 27, 16          # HW = 729 -> tiles of 512 -> ragged tail
    c1 = jax.random.normal(k[4], (B, Cc, Hc, Wc), dtype=jnp.float32)
    c2 = jax.random.normal(k[5], (B, Cc, Hc, Wc), dtype=jnp.float32)
    out3 = jax.block_until_ready(
        cosine_sim_loss(c1, c2, negative=True, loss_weight=0.5,
                        max_tile_bytes=1))
    ref3 = _reference(c1, c2, negative=True, loss_weight=0.5)
    assert jnp.allclose(out3, ref3, atol=1e-5, rtol=1e-5), (out3, ref3)

    # 4) Spatial size below one lane tile (block last dim == full HW == 100).
    d1 = jax.random.normal(k[6], (B, C, 10, 10), dtype=jnp.float32)
    d2 = jax.random.normal(k[7], (B, C, 10, 10), dtype=jnp.float32)
    out4 = jax.block_until_ready(cosine_sim_loss(d1, d2))
    ref4 = _reference(d1, d2)
    assert jnp.allclose(out4, ref4, atol=1e-5, rtol=1e-5), (out4, ref4)

    # 5) with_norm=False path.
    out5 = jax.block_until_ready(cosine_sim_loss(a, b, with_norm=False))
    ref5 = _reference(a, b, with_norm=False)
    assert jnp.allclose(out5, ref5, atol=1e-4, rtol=1e-4), (out5, ref5)

    print("KERNEL_OK")
</pallas_src>

<mosaic_0001>
module attributes {stable_mosaic.version = 11 : i64} {
  func.func @_cosine_sim_loss_kernel(%arg0: i32, %arg1: i32, %arg2: memref<2x4x256xf32, #tpu.memory_space<vmem>>, %arg3: memref<2x4x256xf32, #tpu.memory_space<vmem>>, %arg4: memref<2x128xf32, #tpu.memory_space<vmem>>, %arg5: memref<2x512xf32, #tpu.memory_space<vmem>>) attributes {dimension_semantics = [#tpu.dimension_semantics<parallel>, #tpu.dimension_semantics<arbitrary>], iteration_bounds = array<i64: 1, 1>, scalar_prefetch = 0 : i64, scratch_operands = 1 : i64, tpu.core_type = #tpu.core_type<tc>, window_params = [{transform_indices = @transform_0, window_bounds = array<i64: 2, 4, 256>}, {transform_indices = @transform_1, window_bounds = array<i64: 2, 4, 256>}, {transform_indices = @transform_2, window_bounds = array<i64: 2, 128>}]} {
    %c0_i32 = arith.constant 0 : i32
    %0 = arith.cmpi eq, %arg1, %c0_i32 : i32
    %1 = arith.extui %0 : i1 to i32
    %c0_i32_0 = arith.constant 0 : i32
    %2 = arith.cmpi ne, %1, %c0_i32_0 : i32
    scf.if %2 {
      %cst_16 = arith.constant 0.000000e+00 : f32
      %25 = vector.broadcast %cst_16 : f32 to vector<2x512xf32>
      %c0_17 = arith.constant 0 : index
      %c0_18 = arith.constant 0 : index
      %26 = vector.load %arg5[%c0_17, %c0_18] : memref<2x512xf32, #tpu.memory_space<vmem>>, vector<2x512xf32>
      tpu.vector_store %arg5[%c0_17, %c0_18], %25 {strides = array<i32>} : memref<2x512xf32, #tpu.memory_space<vmem>>, vector<2x512xf32>,
    } else {
    }
    %c0 = arith.constant 0 : index
    %c0_1 = arith.constant 0 : index
    %c0_2 = arith.constant 0 : index
    %3 = vector.load %arg2[%c0, %c0_1, %c0_2] : memref<2x4x256xf32, #tpu.memory_space<vmem>>, vector<2x4x256xf32>
    %c0_3 = arith.constant 0 : index
    %c0_4 = arith.constant 0 : index
    %c0_5 = arith.constant 0 : index
    %4 = vector.load %arg3[%c0_3, %c0_4, %c0_5] : memref<2x4x256xf32, #tpu.memory_space<vmem>>, vector<2x4x256xf32>
    %5 = arith.mulf %3, %4 : vector<2x4x256xf32>
    %cst = arith.constant dense<0.000000e+00> : vector<2x256xf32>
    %6 = vector.multi_reduction <add>, %5, %cst [1] : vector<2x4x256xf32> to vector<2x256xf32>
    %7 = arith.mulf %3, %3 : vector<2x4x256xf32>
    %cst_6 = arith.constant dense<0.000000e+00> : vector<2x256xf32>
    %8 = vector.multi_reduction <add>, %7, %cst_6 [1] : vector<2x4x256xf32> to vector<2x256xf32>
    %9 = arith.mulf %4, %4 : vector<2x4x256xf32>
    %cst_7 = arith.constant dense<0.000000e+00> : vector<2x256xf32>
    %10 = vector.multi_reduction <add>, %9, %cst_7 [1] : vector<2x4x256xf32> to vector<2x256xf32>
    %cst_8 = arith.constant 1.000000e-24 : f32
    %11 = vector.broadcast %cst_8 : f32 to vector<2x256xf32>
    %12 = arith.maximumf %8, %11 : vector<2x256xf32>
    %13 = math.rsqrt %12 : vector<2x256xf32>
    %14 = arith.mulf %6, %13 : vector<2x256xf32>
    %cst_9 = arith.constant 1.000000e-24 : f32
    %15 = vector.broadcast %cst_9 : f32 to vector<2x256xf32>
    %16 = arith.maximumf %10, %15 : vector<2x256xf32>
    %17 = math.rsqrt %16 : vector<2x256xf32>
    %18 = arith.mulf %14, %17 : vector<2x256xf32>
    %c0_10 = arith.constant 0 : index
    %c0_11 = arith.constant 0 : index
    %19 = vector.load %arg5[%c0_10, %c0_11] : memref<2x512xf32, #tpu.memory_space<vmem>>, vector<2x256xf32>
    %20 = arith.addf %19, %18 : vector<2x256xf32>
    %c0_12 = arith.constant 0 : index
    %c0_13 = arith.constant 0 : index
    %21 = vector.load %arg5[%c0_12, %c0_13] : memref<2x512xf32, #tpu.memory_space<vmem>>, vector<2x256xf32>
    tpu.vector_store %arg5[%c0_12, %c0_13], %20 {strides = array<i32>} : memref<2x512xf32, #tpu.memory_space<vmem>>, vector<2x256xf32>,
    %c0_i32_14 = arith.constant 0 : i32
    %22 = arith.cmpi eq, %arg1, %c0_i32_14 : i32
    %23 = arith.extui %22 : i1 to i32
    %c0_i32_15 = arith.constant 0 : i32
    %24 = arith.cmpi ne, %23, %c0_i32_15 : i32
    scf.if %24 {
      %c0_16 = arith.constant 0 : index
      %c0_17 = arith.constant 0 : index
      %25 = vector.load %arg5[%c0_16, %c0_17] : memref<2x512xf32, #tpu.memory_space<vmem>>, vector<2x512xf32>
      %cst_18 = arith.constant dense<0.000000e+00> : vector<2xf32>
      %26 = vector.multi_reduction <add>, %25, %cst_18 [1] : vector<2x512xf32> to vector<2xf32>
      %27 = vector.shape_cast %26 : vector<2xf32> to vector<2x1xf32>
      %cst_19 = arith.constant 3.906250e-03 : f32
      %28 = vector.broadcast %cst_19 : f32 to vector<2x1xf32>
      %29 = arith.mulf %27, %28 : vector<2x1xf32>
      %cst_20 = arith.constant 2.000000e+00 : f32
      %30 = vector.broadcast %cst_20 : f32 to vector<2x1xf32>
      %31 = arith.mulf %30, %29 : vector<2x1xf32>
      %cst_21 = arith.constant 2.000000e+00 : f32
      %32 = vector.broadcast %cst_21 : f32 to vector<2x1xf32>
      %33 = arith.subf %32, %31 : vector<2x1xf32>
      %cst_22 = arith.constant 1.000000e+00 : f32
      %34 = vector.broadcast %cst_22 : f32 to vector<2x1xf32>
      %35 = arith.mulf %33, %34 : vector<2x1xf32>
      %36 = vector.shape_cast %35 : vector<2x1xf32> to vector<2x1xf32>
      %37 = vector.broadcast %36 : vector<2x1xf32> to vector<2x128xf32>
      %c0_23 = arith.constant 0 : index
      %c0_24 = arith.constant 0 : index
      %38 = vector.load %arg4[%c0_23, %c0_24] : memref<2x128xf32, #tpu.memory_space<vmem>>, vector<2x128xf32>
      tpu.vector_store %arg4[%c0_23, %c0_24], %37 {strides = array<i32>} : memref<2x128xf32, #tpu.memory_space<vmem>>, vector<2x128xf32>,
    } else {
    }
    return
  }
  func.func @transform_0(%arg0: i32, %arg1: i32) -> (i32, i32, i32) {
    %c0_i32 = arith.constant 0 : i32
    %c0_i32_0 = arith.constant 0 : i32
    return %arg0, %c0_i32, %arg1 : i32, i32, i32
  }
  func.func @transform_1(%arg0: i32, %arg1: i32) -> (i32, i32, i32) {
    %c0_i32 = arith.constant 0 : i32
    %c0_i32_0 = arith.constant 0 : i32
    return %arg0, %c0_i32, %arg1 : i32, i32, i32
  }
  func.func @transform_2(%arg0: i32, %arg1: i32) -> (i32, i32) {
    %c0_i32 = arith.constant 0 : i32
    %c0_i32_0 = arith.constant 0 : i32
    return %arg0, %c0_i32 : i32, i32
  }
}

</mosaic_0001>

<llo_original>
// kernel: tpu_custom_call.1
$region0: #{tpu_custom_call.1}
  #allocation0 [shape = 'u32[]', space=smem, size = 0x4, offset = 0x4, fixed_abs, tag = 'smem constant byte address 0x4 - core index']
  #allocation1 [shape = 'u32[144,128]{1,0:T(1,128)}', space=vmem, size = 0x12000, scoped, tag = 'internal scratch']
  #allocation2 [shape = 'f32[2,512]{1,0:T(2,128)}', space=vmem, size = 0x1000, scoped, tag = 'scratch operand']
  %s0 = inlined_call_operand.hbm [shape: f32[2,4,256], index: 0, kind: input, shape index: {}]
  %s1 = inlined_call_operand.hbm [shape: f32[2,4,256], index: 1, kind: input, shape index: {}]
  %s2 = inlined_call_operand.hbm [shape: f32[2,128], index: 2, kind: output, shape index: {}]
  %s3 = sld [smem:[#allocation0]]
  $region34: #{tpu_custom_call.1} parent=0
    _
  %s5 = ssub.s32 1, %s3
  %s6 = scalar_select 0, %s5, %s3
  $region1: #{tpu_custom_call.1} parent=0
    #allocation3 [shape = 'u8[8192]{0}', space=vmem, size = 0x2000, scoped, tag = 'input window, operand 0, single buffered']
    #allocation4 [shape = 's32[1]{0}', space=sflag, size = 0x4, scoped, tag = 'scoped memory for tpu_custom_call.1']
    #allocation5 [shape = 's32[1]{0}', space=sflag, size = 0x4, scoped, tag = 'scoped memory for tpu_custom_call.1']
    #allocation6 [shape = 'u8[8192]{0}', space=vmem, size = 0x2000, scoped, tag = 'input window, operand 1, single buffered']
    #allocation7 [shape = 's32[1]{0}', space=sflag, size = 0x4, scoped, tag = 'scoped memory for tpu_custom_call.1']
    #allocation8 [shape = 'u8[1024]{0}', space=vmem, size = 0x400, scoped, tag = 'output window, operand 0, single buffered']
    %7 = vsyncpa [#allocation4], 0
    %8 = vsyncpa [#allocation7], 0
    %9 = vsyncpa [#allocation5], 0
    // Predicated region
    $region2: #{tpu_custom_call.1} parent=1 // pred_check
      _
    $region3: #{tpu_custom_call.1} parent=1 // pred_check_branch
      %11 = sbr.rel (0) target = $region5
    $region4: #{tpu_custom_call.1} parent=1 // pred_region
      %s13 = ssub.s32 256, 256
      %14 = vsyncadd [#allocation4], %s13
      %s15 = sshll.u32 [#allocation3], 4
      %s16 = int_to_ptr.vmem [resolvable:$true] %s15
      %21 = dma.hbm_to_vmem [thread:$0]  %s0, 256, %s16, [#allocation4], 128, 128, 8
    $region5: #{tpu_custom_call.1} parent=1 // pred_fallthru
      _
    // Predicated region
    $region6: #{tpu_custom_call.1} parent=1 // pred_check
      _
    $region7: #{tpu_custom_call.1} parent=1 // pred_check_branch
      %23 = sbr.rel (0) target = $region9
    $region8: #{tpu_custom_call.1} parent=1 // pred_region
      %s25 = ssub.s32 256, 256
      %26 = vsyncadd [#allocation7], %s25
      %s27 = sshll.u32 [#allocation6], 4
      %s28 = int_to_ptr.vmem [resolvable:$true] %s27
      %33 = dma.hbm_to_vmem [thread:$0]  %s1, 256, %s28, [#allocation7], 128, 128, 8
    $region9: #{tpu_custom_call.1} parent=1 // pred_fallthru
      _
    // Predicated region
    $region10: #{tpu_custom_call.1} parent=1 // pred_check
      _
    $region11: #{tpu_custom_call.1} parent=1 // pred_check_branch
      %35 = sbr.rel (0) target = $region13
    $region12: #{tpu_custom_call.1} parent=1 // pred_region
      %36 = dma.done [#allocation4], 256
    $region13: #{tpu_custom_call.1} parent=1 // pred_fallthru
      _
    // Predicated region
    $region14: #{tpu_custom_call.1} parent=1 // pred_check
      _
    $region15: #{tpu_custom_call.1} parent=1 // pred_check_branch
      %38 = sbr.rel (0) target = $region17
    $region16: #{tpu_custom_call.1} parent=1 // pred_region
      %39 = dma.done [#allocation7], 256
    $region17: #{tpu_custom_call.1} parent=1 // pred_fallthru
      _
    %p40 = scmp.eq.s32.totalorder 0, 0
    // Predicated region
    $region18: #{tpu_custom_call.1} parent=1 // pred_check
      %p41 = pneg %p40
    $region19: #{tpu_custom_call.1} parent=1 // pred_check_branch
      %43 = sbr.rel (%p41) target = $region21
    $region20: #{tpu_custom_call.1} parent=1 // pred_region
      %44 = vst [vmem:[#allocation2] sm:$0xff] 0.0
    $region21: #{tpu_custom_call.1} parent=1 // pred_fallthru
      _
    %v45 = vld [vmem:[#allocation3] sm:$0xff]
    %v46 = vld [vmem:[#allocation3 + $0x8] sm:$0xff]
    %v47 = vld [vmem:[#allocation6] sm:$0xff]
    %v48 = vld [vmem:[#allocation6 + $0x8] sm:$0xff]
    %v49 = vmul.f32 %v45, %v47
    %v50 = vmul.f32 %v46, %v48
    %v53 = vcombine.high %v49, %v49
    %v54 = vcombine.high %v50, %v50
    %vm57 = vcmask 1043456
    %v58 = vsel %vm57, %v49, 0.0
    %v59 = vrot.slane %v58, 4
    %v60 = vadd.f32 %v58, %v59
    %v61 = vrot.slane %v60, 2
    %v62 = vadd.f32 %v60, %v61
    %v63 = vrot.slane %v62, 1
    %v64 = vadd.f32 %v62, %v63
    %v65 = vsel %vm57, %v53, 0.0
    %v66 = vrot.slane %v65, 4
    %v67 = vadd.f32 %v65, %v66
    %v68 = vrot.slane %v67, 2
    %v69 = vadd.f32 %v67, %v68
    %v70 = vrot.slane %v69, 1
    %v71 = vadd.f32 %v69, %v70
    %v72 = vsel %vm57, %v50, 0.0
    %v73 = vrot.slane %v72, 4
    %v74 = vadd.f32 %v72, %v73
    %v75 = vrot.slane %v74, 2
    %v76 = vadd.f32 %v74, %v75
    %v77 = vrot.slane %v76, 1
    %v78 = vadd.f32 %v76, %v77
    %v79 = vsel %vm57, %v54, 0.0
    %v80 = vrot.slane %v79, 4
    %v81 = vadd.f32 %v79, %v80
    %v82 = vrot.slane %v81, 2
    %v83 = vadd.f32 %v81, %v82
    %v84 = vrot.slane %v83, 1
    %v85 = vadd.f32 %v83, %v84
    %v86 = vmul.f32 %v45, %v45
    %v87 = vmul.f32 %v46, %v46
    %v90 = vcombine.high %v86, %v86
    %v91 = vcombine.high %v87, %v87
    %v94 = vsel %vm57, %v86, 0.0
    %v95 = vrot.slane %v94, 4
    %v96 = vadd.f32 %v94, %v95
    %v97 = vrot.slane %v96, 2
    %v98 = vadd.f32 %v96, %v97
    %v99 = vrot.slane %v98, 1
    %v100 = vadd.f32 %v98, %v99
    %v101 = vsel %vm57, %v90, 0.0
    %v102 = vrot.slane %v101, 4
    %v103 = vadd.f32 %v101, %v102
    %v104 = vrot.slane %v103, 2
    %v105 = vadd.f32 %v103, %v104
    %v106 = vrot.slane %v105, 1
    %v107 = vadd.f32 %v105, %v106
    %v108 = vsel %vm57, %v87, 0.0
    %v109 = vrot.slane %v108, 4
    %v110 = vadd.f32 %v108, %v109
    %v111 = vrot.slane %v110, 2
    %v112 = vadd.f32 %v110, %v111
    %v113 = vrot.slane %v112, 1
    %v114 = vadd.f32 %v112, %v113
    %v115 = vsel %vm57, %v91, 0.0
    %v116 = vrot.slane %v115, 4
    %v117 = vadd.f32 %v115, %v116
    %v118 = vrot.slane %v117, 2
    %v119 = vadd.f32 %v117, %v118
    %v120 = vrot.slane %v119, 1
    %v121 = vadd.f32 %v119, %v120
    %v122 = vmul.f32 %v47, %v47
    %v123 = vmul.f32 %v48, %v48
    %v126 = vcombine.high %v122, %v122
    %v127 = vcombine.high %v123, %v123
    %v130 = vsel %vm57, %v122, 0.0
    %v131 = vrot.slane %v130, 4
    %v132 = vadd.f32 %v130, %v131
    %v133 = vrot.slane %v132, 2
    %v134 = vadd.f32 %v132, %v133
    %v135 = vrot.slane %v134, 1
    %v136 = vadd.f32 %v134, %v135
    %v137 = vsel %vm57, %v126, 0.0
    %v138 = vrot.slane %v137, 4
    %v139 = vadd.f32 %v137, %v138
    %v140 = vrot.slane %v139, 2
    %v141 = vadd.f32 %v139, %v140
    %v142 = vrot.slane %v141, 1
    %v143 = vadd.f32 %v141, %v142
    %v144 = vsel %vm57, %v123, 0.0
    %v145 = vrot.slane %v144, 4
    %v146 = vadd.f32 %v144, %v145
    %v147 = vrot.slane %v146, 2
    %v148 = vadd.f32 %v146, %v147
    %v149 = vrot.slane %v148, 1
    %v150 = vadd.f32 %v148, %v149
    %v151 = vsel %vm57, %v127, 0.0
    %v152 = vrot.slane %v151, 4
    %v153 = vadd.f32 %v151, %v152
    %v154 = vrot.slane %v153, 2
    %v155 = vadd.f32 %v153, %v154
    %v156 = vrot.slane %v155, 1
    %v157 = vadd.f32 %v155, %v156
    %v158 = vmax.f32 %v100, 1e-24
    %v159 = vmax.f32 %v107, 1e-24
    %v160 = vmax.f32 %v114, 1e-24
    %v161 = vmax.f32 %v121, 1e-24
    %v162 = vrsqrt.pop %v158
    %v163 = vrsqrt.pop %v159
    %v164 = vrsqrt.pop %v160
    %v165 = vrsqrt.pop %v161
    %v166 = vmul.f32 %v64, %v162
    %v167 = vmul.f32 %v71, %v163
    %v168 = vmul.f32 %v78, %v164
    %v169 = vmul.f32 %v85, %v165
    %v170 = vmax.f32 %v136, 1e-24
    %v171 = vmax.f32 %v143, 1e-24
    %v172 = vmax.f32 %v150, 1e-24
    %v173 = vmax.f32 %v157, 1e-24
    %v174 = vrsqrt.pop %v170
    %v175 = vrsqrt.pop %v171
    %v176 = vrsqrt.pop %v172
    %v177 = vrsqrt.pop %v173
    %v178 = vmul.f32 %v166, %v174
    %v179 = vmul.f32 %v167, %v175
    %v180 = vmul.f32 %v168, %v176
    %v181 = vmul.f32 %v169, %v177
    %v182 = vld [vmem:[#allocation2] sm:$0xf]
    %v187 = vcombine.low %v178, %v179
    %v189 = vunpack.c.l.s4 1983009808
    %v190 = vunpack.c.0.s8 %v189
    %v191 = vlaneseq
    %v192 = vshrl.u32 %v191, 7
    %v193 = vsub.s32 %v190, %v192
    %v194 = vrot.slane %v187, %v193
    %v195 = vcombine.low %v180, %v181
    %v197 = vunpack.c.l.s4 1983009808
    %v198 = vunpack.c.0.s8 %v197
    %v199 = vlaneseq
    %v200 = vshrl.u32 %v199, 7
    %v201 = vsub.s32 %v198, %v200
    %v202 = vrot.slane %v195, %v201
    %vm203 = vcmask 1044484
    %v204 = vsel %vm203, %v194, %v194
    %vm205 = vcmask 1046534
    %v206 = vsel %vm205, %v194, %v204
    %v207 = vrot.slane %v202, 7
    %vm208 = vcmask 1041409
    %v209 = vsel %vm208, %v207, %v206
    %vm210 = vcmask 1043459
    %v211 = vsel %vm210, %v207, %v209
    %vm212 = vcmask 1045509
    %v213 = vsel %vm212, %v207, %v211
    %vm214 = vcmask 1047559
    %v215 = vsel %vm214, %v207, %v213
    %v217 = vadd.f32 %v182, %v215
    %218 = vst [vmem:[#allocation2] sm:$0xf] %v217
    // Predicated region
    $region22: #{tpu_custom_call.1} parent=1 // pred_check
      %p219 = pneg %p40
    $region23: #{tpu_custom_call.1} parent=1 // pred_check_branch
      %221 = sbr.rel (%p219) target = $region25
    $region24: #{tpu_custom_call.1} parent=1 // pred_region
      %v222 = vld [vmem:[#allocation2] sm:$0xff]
      %v224 = vcombine.high %v222, %v222
      %v226 = vunpack.c.l.s4 1983009808
      %v227 = vunpack.c.0.s8 %v226
      %v228 = vlaneseq
      %v229 = vshrl.u32 %v228, 7
      %v230 = vsub.s32 %v227, %v229
      %v231 = vrot.slane %v222, %v230
      %v233 = vunpack.c.l.s4 1983009808
      %v234 = vunpack.c.0.s8 %v233
      %v235 = vlaneseq
      %v236 = vshrl.u32 %v235, 7
      %v237 = vsub.s32 %v234, %v236
      %v238 = vrot.slane %v224, %v237
      %v239 = vcombine.high %v231, %v231
      %v240 = vcombine.high %v238, %v238
      %vm245 = vcmask 1041408
      %v246 = vsel %vm245, %v231, 0.0
      %v247 = vsel %vm245, %v239, 0.0
      %v248 = vadd.f32 %v246, %v247
      %v249 = vsel %vm245, %v238, 0.0
      %v250 = vadd.f32 %v248, %v249
      %v251 = vsel %vm245, %v240, 0.0
      %v252 = vadd.f32 %v250, %v251
      %253 = vadd.xlane.f32.xlu0 %v252
      %v254 = vpop.xlane.xlu0 %253
      %v255 = vmul.f32 %v254, 0.00390625
      %v256 = vmul.f32 %v255, 2.0
      %v257 = vsub.f32 2.0, %v256
      %258 = vst [vmem:[#allocation8] sm:$0x3] %v257
    $region25: #{tpu_custom_call.1} parent=1 // pred_fallthru
      _
    // Predicated region
    $region26: #{tpu_custom_call.1} parent=1 // pred_check
      _
    $region27: #{tpu_custom_call.1} parent=1 // pred_check_branch
      %260 = sbr.rel (0) target = $region29
    $region28: #{tpu_custom_call.1} parent=1 // pred_region
      %s262 = ssub.s32 32, 32
      %263 = vsyncadd [#allocation5], %s262
      %s265 = sshll.u32 [#allocation8], 4
      %s266 = int_to_ptr.vmem [resolvable:$true] %s265
      %268 = dma.vmem_to_hbm [thread:$0]  %s266, 32, %s2, [#allocation5]
    $region29: #{tpu_custom_call.1} parent=1 // pred_fallthru
      _
    // Predicated region
    $region30: #{tpu_custom_call.1} parent=1 // pred_check
      _
    $region31: #{tpu_custom_call.1} parent=1 // pred_check_branch
      %270 = sbr.rel (0) target = $region33
    $region32: #{tpu_custom_call.1} parent=1 // pred_region
      %271 = dma.done [#allocation5], 32
    $region33: #{tpu_custom_call.1} parent=1 // pred_fallthru
      _
    %272 = vsyncpa [#allocation4], 1
    %273 = vsyncpa [#allocation7], 1
    %274 = vsyncpa [#allocation5], 1

</llo_original>
